<compile_context>
chip_gen: v5e
topology: v5e:2x2
jax: 0.10.0
libtpu: 0.0.40
codegen_flags: <defaults>
</compile_context>

<pallas_src>
import functools
import math

import jax
import jax.numpy as jnp
from jax.experimental import pallas as pl
from jax.experimental.pallas import tpu as pltpu


def _mha_kernel(x_ref, wqkv_ref, bqkv_ref, wo_ref, bo_ref, o_ref,
                qkv_ref, attn_ref, *, num_heads, head_dim, approx_recip):
    c = x_ref.shape[2]
    hd = head_dim

    xc = x_ref[0]                                                   # (N, C), compute dtype

    # ---- Fused QKV projection: one full-width MXU matmul. ----------------
    qkv = (jnp.dot(xc, wqkv_ref[...], preferred_element_type=jnp.float32)
           + bqkv_ref[...])                                         # (N, 3C) f32
    qkv_ref[...] = qkv.astype(qkv_ref.dtype)

    # ---- Per-head attention core (static lane slices). -------------------
    # Layout of the 3C lane axis matches the torch reshape (3, H, hd):
    #   Q head h -> cols [h*hd, (h+1)*hd), K -> C + ..., V -> 2C + ...
    for h in range(num_heads):
        lo = h * hd
        hi = lo + hd
        q_h = qkv_ref[:, lo:hi]                                     # (N, hd)
        k_h = qkv_ref[:, c + lo:c + hi]                             # (N, hd)
        v_h = qkv_ref[:, 2 * c + lo:2 * c + hi]                     # (N, hd)

        # q @ k^T (scale already folded into Q weights/bias in the wrapper).
        s = jax.lax.dot_general(q_h, k_h, (((1,), (1,)), ((), ())),
                                preferred_element_type=jnp.float32)  # (N, N)

        # Numerically stable softmax numerator in f32.
        m = jnp.max(s, axis=-1, keepdims=True)
        p = jnp.exp(s - m)
        l = jnp.sum(p, axis=-1, keepdims=True)

        # Unnormalized p @ v; normalize the small (N, hd) output instead of
        # the (N, N) probability tile (deferred softmax normalization).
        o_h = jnp.dot(p.astype(v_h.dtype), v_h,
                      preferred_element_type=jnp.float32)           # (N, hd)
        if approx_recip:
            o_h = o_h * pl.reciprocal(l, approx=True)
        else:
            o_h = o_h / l

        # Dropout p=0.0 (module default) -> identity.
        attn_ref[:, lo:hi] = o_h.astype(attn_ref.dtype)

    # ---- Fused output projection: one (N,C)@(C,C) matmul + bias. ---------
    out = (jnp.dot(attn_ref[...], wo_ref[...],
                   preferred_element_type=jnp.float32) + bo_ref[...])
    o_ref[0] = out.astype(o_ref.dtype)


def multi_head_attention(x, w_qkv, b_qkv, w_out, b_out, *, num_heads,
                         compute_dtype=jnp.bfloat16):
    """x: (B, N, C); w_qkv: (C, 3C); b_qkv: (3C,); w_out: (C, C); b_out: (C,).

    Weight convention: y = x @ W + b (W stored as (in_features, out_features),
    i.e. the transpose of torch.nn.Linear's weight layout).
    """
    B, N, C = x.shape
    H = num_heads
    hd = C // H
    assert hd * H == C, "embed_dim must be divisible by num_heads"
    scale = 1.0 / math.sqrt(hd)
    out_dtype = x.dtype

    # ---- Wrapper-side restructuring (free relative to the kernel). -------
    # Fold the softmax scale into the Q columns of w_qkv / b_qkv; keep the
    # fused (C, 3C) layout so the kernel does one full-width projection.
    scale_row = jnp.concatenate(
        [jnp.full((C,), scale, dtype=jnp.float32),
         jnp.ones((2 * C,), dtype=jnp.float32)])
    w_qkv_s = (w_qkv.astype(jnp.float32) * scale_row[None, :]).astype(compute_dtype)
    b_qkv_s = (b_qkv.astype(jnp.float32) * scale_row).reshape(1, 3 * C)   # f32
    wo = w_out.astype(compute_dtype)                                      # (C, C)
    bo = b_out.astype(jnp.float32).reshape(1, C)                          # (1, C)
    x_in = x.astype(compute_dtype)     # cast once here, not in-kernel

    approx_recip = (jnp.dtype(compute_dtype) != jnp.dtype(jnp.float32))
    kernel = functools.partial(_mha_kernel, num_heads=H, head_dim=hd,
                               approx_recip=approx_recip)

    # ---- Derive the scoped-VMEM budget from actual buffer sizes. ---------
    cd = jnp.dtype(compute_dtype).itemsize
    od = jnp.dtype(out_dtype).itemsize
    est = (2 * N * C * cd                 # x block (double-buffered)
           + 2 * N * C * od               # out block (double-buffered)
           + C * 3 * C * cd               # w_qkv (Buffered(1))
           + 3 * C * 4 + C * C * cd + C * 4   # b_qkv, w_out, b_out
           + N * 3 * C * cd + N * C * cd      # qkv / attn scratch
           + 4 * N * N * 4)               # per-head score/exp f32 temporaries
    vmem_limit = int(min(max(est * 1.5 + (4 << 20), 32 << 20), 64 << 20))

    const_map = lambda b: (0, 0)

    return pl.pallas_call(
        kernel,
        out_shape=jax.ShapeDtypeStruct((B, N, C), out_dtype),
        grid_spec=pltpu.PrefetchScalarGridSpec(
            num_scalar_prefetch=0,
            grid=(B,),
            in_specs=[
                pl.BlockSpec((1, N, C), lambda b: (b, 0, 0)),             # x
                # Constant blocks: single-buffer them (no re-DMA, half VMEM).
                pl.BlockSpec((C, 3 * C), const_map,
                             pipeline_mode=pl.Buffered(1)),               # w_qkv (Q pre-scaled)
                pl.BlockSpec((1, 3 * C), const_map,
                             pipeline_mode=pl.Buffered(1)),               # b_qkv (Q pre-scaled)
                pl.BlockSpec((C, C), const_map,
                             pipeline_mode=pl.Buffered(1)),               # w_out
                pl.BlockSpec((1, C), const_map,
                             pipeline_mode=pl.Buffered(1)),               # b_out
            ],
            out_specs=pl.BlockSpec((1, N, C), lambda b: (b, 0, 0)),
            scratch_shapes=[
                pltpu.VMEM((N, 3 * C), compute_dtype),   # fused QKV activations
                pltpu.VMEM((N, C), compute_dtype),       # merged-head context
            ],
        ),
        compiler_params=pltpu.CompilerParams(
            dimension_semantics=("parallel",),
            vmem_limit_bytes=vmem_limit,
        ),
    )(x_in, w_qkv_s, b_qkv_s, wo, bo)


def _reference(x, w_qkv, b_qkv, w_out, b_out, num_heads):
    """Pure-JAX reference mirroring the PyTorch forward."""
    B, N, C = x.shape
    hd = C // num_heads
    qkv = x @ w_qkv + b_qkv                               # (B, N, 3C)
    qkv = qkv.reshape(B, N, 3, num_heads, hd).transpose(2, 0, 3, 1, 4)
    q, k, v = qkv[0], qkv[1], qkv[2]                      # (B, H, N, hd)
    attn = (q @ jnp.swapaxes(k, -2, -1)) / math.sqrt(hd)
    attn = jax.nn.softmax(attn, axis=-1)
    out = (attn @ v).transpose(0, 2, 1, 3).reshape(B, N, C)
    return out @ w_out + b_out


if __name__ == "__main__":
    # Small shapes consistent with the module: embed_dim divisible by num_heads.
    B, N, C = 2, 8, 32
    num_heads = 4

    key = jax.random.PRNGKey(0)
    kx, k1, k2, k3, k4 = jax.random.split(key, 5)

    x = jax.random.normal(kx, (B, N, C), dtype=jnp.float32)

    bound = 1.0 / math.sqrt(C)
    w_qkv = jax.random.uniform(k1, (C, 3 * C), jnp.float32, -bound, bound)
    b_qkv = jax.random.uniform(k2, (3 * C,), jnp.float32, -bound, bound)
    w_out = jax.random.uniform(k3, (C, C), jnp.float32, -bound, bound)
    b_out = jax.random.uniform(k4, (C,), jnp.float32, -bound, bound)

    ref = _reference(x, w_qkv, b_qkv, w_out, b_out, num_heads)

    # f32 compute path: tight check of the kernel math (exact reciprocal).
    out_f32 = jax.block_until_ready(
        multi_head_attention(x, w_qkv, b_qkv, w_out, b_out,
                             num_heads=num_heads, compute_dtype=jnp.float32))
    assert out_f32.shape == (B, N, C)
    assert jnp.allclose(out_f32, ref, atol=2e-3, rtol=2e-3), \
        "f32 kernel mismatch vs reference"

    # bf16 MXU path (default, the perf configuration): loosened tolerance.
    out_bf16 = jax.block_until_ready(
        multi_head_attention(x, w_qkv, b_qkv, w_out, b_out,
                             num_heads=num_heads))
    assert out_bf16.shape == (B, N, C)
    assert jnp.allclose(out_bf16, ref, atol=5e-2, rtol=5e-2), \
        "bf16 kernel mismatch vs reference"

    print("KERNEL_OK")
</pallas_src>

<mosaic_0001>
module attributes {stable_mosaic.version = 11 : i64} {
  func.func @_mha_kernel(%arg0: i32, %arg1: memref<1x8x32xf32, #tpu.memory_space<vmem>>, %arg2: memref<32x96xf32, #tpu.memory_space<vmem>>, %arg3: memref<1x96xf32, #tpu.memory_space<vmem>>, %arg4: memref<32x32xf32, #tpu.memory_space<vmem>>, %arg5: memref<1x32xf32, #tpu.memory_space<vmem>>, %arg6: memref<1x8x32xf32, #tpu.memory_space<vmem>>, %arg7: memref<8x96xf32, #tpu.memory_space<vmem>>, %arg8: memref<8x32xf32, #tpu.memory_space<vmem>>) attributes {dimension_semantics = [#tpu.dimension_semantics<parallel>], iteration_bounds = array<i64: 2>, scalar_prefetch = 0 : i64, scratch_operands = 2 : i64, tpu.core_type = #tpu.core_type<tc>, window_params = [{transform_indices = @transform_0, window_bounds = array<i64: 1, 8, 32>}, {pipeline_mode = #tpu.pipeline_mode<synchronous>, transform_indices = @transform_1, window_bounds = array<i64: 32, 96>}, {pipeline_mode = #tpu.pipeline_mode<synchronous>, transform_indices = @transform_2, window_bounds = array<i64: 1, 96>}, {pipeline_mode = #tpu.pipeline_mode<synchronous>, transform_indices = @transform_3, window_bounds = array<i64: 32, 32>}, {pipeline_mode = #tpu.pipeline_mode<synchronous>, transform_indices = @transform_4, window_bounds = array<i64: 1, 32>}, {transform_indices = @transform_5, window_bounds = array<i64: 1, 8, 32>}]} {
    %c0 = arith.constant 0 : index
    %c0_0 = arith.constant 0 : index
    %c0_1 = arith.constant 0 : index
    %0 = vector.load %arg1[%c0, %c0_0, %c0_1] : memref<1x8x32xf32, #tpu.memory_space<vmem>>, vector<1x8x32xf32>
    %1 = vector.shape_cast %0 : vector<1x8x32xf32> to vector<8x32xf32>
    %c0_2 = arith.constant 0 : index
    %c0_3 = arith.constant 0 : index
    %2 = vector.load %arg2[%c0_2, %c0_3] : memref<32x96xf32, #tpu.memory_space<vmem>>, vector<32x96xf32>
    %cst = arith.constant dense<0.000000e+00> : vector<8x96xf32>
    %3 = tpu.matmul %1, %2, %cst {dimension_numbers = #tpu.dot_dimension_numbers<[1], [0], [0], [1], [0, 0, 1, 1], [], []>} : vector<8x32xf32>, vector<32x96xf32>, vector<8x96xf32> -> vector<8x96xf32>
    %c0_4 = arith.constant 0 : index
    %c0_5 = arith.constant 0 : index
    %4 = vector.load %arg3[%c0_4, %c0_5] : memref<1x96xf32, #tpu.memory_space<vmem>>, vector<1x96xf32>
    %5 = vector.broadcast %4 : vector<1x96xf32> to vector<8x96xf32>
    %6 = arith.addf %3, %5 : vector<8x96xf32>
    %c0_6 = arith.constant 0 : index
    %c0_7 = arith.constant 0 : index
    %7 = vector.load %arg7[%c0_6, %c0_7] : memref<8x96xf32, #tpu.memory_space<vmem>>, vector<8x96xf32>
    tpu.vector_store %arg7[%c0_6, %c0_7], %6 {strides = array<i32>} : memref<8x96xf32, #tpu.memory_space<vmem>>, vector<8x96xf32>,
    %c0_8 = arith.constant 0 : index
    %c0_9 = arith.constant 0 : index
    %8 = vector.load %arg7[%c0_8, %c0_9] : memref<8x96xf32, #tpu.memory_space<vmem>>, vector<8x8xf32>
    %c0_10 = arith.constant 0 : index
    %c32 = arith.constant 32 : index
    %9 = vector.load %arg7[%c0_10, %c32] : memref<8x96xf32, #tpu.memory_space<vmem>>, vector<8x8xf32>
    %c0_11 = arith.constant 0 : index
    %c64 = arith.constant 64 : index
    %10 = vector.load %arg7[%c0_11, %c64] : memref<8x96xf32, #tpu.memory_space<vmem>>, vector<8x8xf32>
    %cst_12 = arith.constant dense<0.000000e+00> : vector<8x8xf32>
    %11 = tpu.matmul %8, %9, %cst_12 {dimension_numbers = #tpu.dot_dimension_numbers<[1], [1], [0], [0], [0, 0, 1, 0], [], []>} : vector<8x8xf32>, vector<8x8xf32>, vector<8x8xf32> -> vector<8x8xf32>
    %cst_13 = arith.constant dense<0xFF800000> : vector<8xf32>
    %12 = vector.multi_reduction <maximumf>, %11, %cst_13 [1] : vector<8x8xf32> to vector<8xf32>
    %13 = vector.shape_cast %12 : vector<8xf32> to vector<8x1xf32>
    %14 = vector.broadcast %13 : vector<8x1xf32> to vector<8x8xf32>
    %15 = arith.subf %11, %14 : vector<8x8xf32>
    %16 = math.exp %15 : vector<8x8xf32>
    %cst_14 = arith.constant dense<0.000000e+00> : vector<8xf32>
    %17 = vector.multi_reduction <add>, %16, %cst_14 [1] : vector<8x8xf32> to vector<8xf32>
    %18 = vector.shape_cast %17 : vector<8xf32> to vector<8x1xf32>
    %cst_15 = arith.constant dense<0.000000e+00> : vector<8x8xf32>
    %19 = tpu.matmul %16, %10, %cst_15 {dimension_numbers = #tpu.dot_dimension_numbers<[1], [0], [0], [1], [0, 0, 1, 1], [], []>} : vector<8x8xf32>, vector<8x8xf32>, vector<8x8xf32> -> vector<8x8xf32>
    %20 = vector.broadcast %18 : vector<8x1xf32> to vector<8x8xf32>
    %21 = arith.divf %19, %20 : vector<8x8xf32>
    %c0_16 = arith.constant 0 : index
    %c0_17 = arith.constant 0 : index
    %22 = vector.load %arg8[%c0_16, %c0_17] : memref<8x32xf32, #tpu.memory_space<vmem>>, vector<8x8xf32>
    tpu.vector_store %arg8[%c0_16, %c0_17], %21 {strides = array<i32>} : memref<8x32xf32, #tpu.memory_space<vmem>>, vector<8x8xf32>,
    %c0_18 = arith.constant 0 : index
    %c8 = arith.constant 8 : index
    %23 = vector.load %arg7[%c0_18, %c8] : memref<8x96xf32, #tpu.memory_space<vmem>>, vector<8x8xf32>
    %c0_19 = arith.constant 0 : index
    %c40 = arith.constant 40 : index
    %24 = vector.load %arg7[%c0_19, %c40] : memref<8x96xf32, #tpu.memory_space<vmem>>, vector<8x8xf32>
    %c0_20 = arith.constant 0 : index
    %c72 = arith.constant 72 : index
    %25 = vector.load %arg7[%c0_20, %c72] : memref<8x96xf32, #tpu.memory_space<vmem>>, vector<8x8xf32>
    %cst_21 = arith.constant dense<0.000000e+00> : vector<8x8xf32>
    %26 = tpu.matmul %23, %24, %cst_21 {dimension_numbers = #tpu.dot_dimension_numbers<[1], [1], [0], [0], [0, 0, 1, 0], [], []>} : vector<8x8xf32>, vector<8x8xf32>, vector<8x8xf32> -> vector<8x8xf32>
    %cst_22 = arith.constant dense<0xFF800000> : vector<8xf32>
    %27 = vector.multi_reduction <maximumf>, %26, %cst_22 [1] : vector<8x8xf32> to vector<8xf32>
    %28 = vector.shape_cast %27 : vector<8xf32> to vector<8x1xf32>
    %29 = vector.broadcast %28 : vector<8x1xf32> to vector<8x8xf32>
    %30 = arith.subf %26, %29 : vector<8x8xf32>
    %31 = math.exp %30 : vector<8x8xf32>
    %cst_23 = arith.constant dense<0.000000e+00> : vector<8xf32>
    %32 = vector.multi_reduction <add>, %31, %cst_23 [1] : vector<8x8xf32> to vector<8xf32>
    %33 = vector.shape_cast %32 : vector<8xf32> to vector<8x1xf32>
    %cst_24 = arith.constant dense<0.000000e+00> : vector<8x8xf32>
    %34 = tpu.matmul %31, %25, %cst_24 {dimension_numbers = #tpu.dot_dimension_numbers<[1], [0], [0], [1], [0, 0, 1, 1], [], []>} : vector<8x8xf32>, vector<8x8xf32>, vector<8x8xf32> -> vector<8x8xf32>
    %35 = vector.broadcast %33 : vector<8x1xf32> to vector<8x8xf32>
    %36 = arith.divf %34, %35 : vector<8x8xf32>
    %c0_25 = arith.constant 0 : index
    %c8_26 = arith.constant 8 : index
    %37 = vector.load %arg8[%c0_25, %c8_26] : memref<8x32xf32, #tpu.memory_space<vmem>>, vector<8x8xf32>
    tpu.vector_store %arg8[%c0_25, %c8_26], %36 {strides = array<i32>} : memref<8x32xf32, #tpu.memory_space<vmem>>, vector<8x8xf32>,
    %c0_27 = arith.constant 0 : index
    %c16 = arith.constant 16 : index
    %38 = vector.load %arg7[%c0_27, %c16] : memref<8x96xf32, #tpu.memory_space<vmem>>, vector<8x8xf32>
    %c0_28 = arith.constant 0 : index
    %c48 = arith.constant 48 : index
    %39 = vector.load %arg7[%c0_28, %c48] : memref<8x96xf32, #tpu.memory_space<vmem>>, vector<8x8xf32>
    %c0_29 = arith.constant 0 : index
    %c80 = arith.constant 80 : index
    %40 = vector.load %arg7[%c0_29, %c80] : memref<8x96xf32, #tpu.memory_space<vmem>>, vector<8x8xf32>
    %cst_30 = arith.constant dense<0.000000e+00> : vector<8x8xf32>
    %41 = tpu.matmul %38, %39, %cst_30 {dimension_numbers = #tpu.dot_dimension_numbers<[1], [1], [0], [0], [0, 0, 1, 0], [], []>} : vector<8x8xf32>, vector<8x8xf32>, vector<8x8xf32> -> vector<8x8xf32>
    %cst_31 = arith.constant dense<0xFF800000> : vector<8xf32>
    %42 = vector.multi_reduction <maximumf>, %41, %cst_31 [1] : vector<8x8xf32> to vector<8xf32>
    %43 = vector.shape_cast %42 : vector<8xf32> to vector<8x1xf32>
    %44 = vector.broadcast %43 : vector<8x1xf32> to vector<8x8xf32>
    %45 = arith.subf %41, %44 : vector<8x8xf32>
    %46 = math.exp %45 : vector<8x8xf32>
    %cst_32 = arith.constant dense<0.000000e+00> : vector<8xf32>
    %47 = vector.multi_reduction <add>, %46, %cst_32 [1] : vector<8x8xf32> to vector<8xf32>
    %48 = vector.shape_cast %47 : vector<8xf32> to vector<8x1xf32>
    %cst_33 = arith.constant dense<0.000000e+00> : vector<8x8xf32>
    %49 = tpu.matmul %46, %40, %cst_33 {dimension_numbers = #tpu.dot_dimension_numbers<[1], [0], [0], [1], [0, 0, 1, 1], [], []>} : vector<8x8xf32>, vector<8x8xf32>, vector<8x8xf32> -> vector<8x8xf32>
    %50 = vector.broadcast %48 : vector<8x1xf32> to vector<8x8xf32>
    %51 = arith.divf %49, %50 : vector<8x8xf32>
    %c0_34 = arith.constant 0 : index
    %c16_35 = arith.constant 16 : index
    %52 = vector.load %arg8[%c0_34, %c16_35] : memref<8x32xf32, #tpu.memory_space<vmem>>, vector<8x8xf32>
    tpu.vector_store %arg8[%c0_34, %c16_35], %51 {strides = array<i32>} : memref<8x32xf32, #tpu.memory_space<vmem>>, vector<8x8xf32>,
    %c0_36 = arith.constant 0 : index
    %c24 = arith.constant 24 : index
    %53 = vector.load %arg7[%c0_36, %c24] : memref<8x96xf32, #tpu.memory_space<vmem>>, vector<8x8xf32>
    %c0_37 = arith.constant 0 : index
    %c56 = arith.constant 56 : index
    %54 = vector.load %arg7[%c0_37, %c56] : memref<8x96xf32, #tpu.memory_space<vmem>>, vector<8x8xf32>
    %c0_38 = arith.constant 0 : index
    %c88 = arith.constant 88 : index
    %55 = vector.load %arg7[%c0_38, %c88] : memref<8x96xf32, #tpu.memory_space<vmem>>, vector<8x8xf32>
    %cst_39 = arith.constant dense<0.000000e+00> : vector<8x8xf32>
    %56 = tpu.matmul %53, %54, %cst_39 {dimension_numbers = #tpu.dot_dimension_numbers<[1], [1], [0], [0], [0, 0, 1, 0], [], []>} : vector<8x8xf32>, vector<8x8xf32>, vector<8x8xf32> -> vector<8x8xf32>
    %cst_40 = arith.constant dense<0xFF800000> : vector<8xf32>
    %57 = vector.multi_reduction <maximumf>, %56, %cst_40 [1] : vector<8x8xf32> to vector<8xf32>
    %58 = vector.shape_cast %57 : vector<8xf32> to vector<8x1xf32>
    %59 = vector.broadcast %58 : vector<8x1xf32> to vector<8x8xf32>
    %60 = arith.subf %56, %59 : vector<8x8xf32>
    %61 = math.exp %60 : vector<8x8xf32>
    %cst_41 = arith.constant dense<0.000000e+00> : vector<8xf32>
    %62 = vector.multi_reduction <add>, %61, %cst_41 [1] : vector<8x8xf32> to vector<8xf32>
    %63 = vector.shape_cast %62 : vector<8xf32> to vector<8x1xf32>
    %cst_42 = arith.constant dense<0.000000e+00> : vector<8x8xf32>
    %64 = tpu.matmul %61, %55, %cst_42 {dimension_numbers = #tpu.dot_dimension_numbers<[1], [0], [0], [1], [0, 0, 1, 1], [], []>} : vector<8x8xf32>, vector<8x8xf32>, vector<8x8xf32> -> vector<8x8xf32>
    %65 = vector.broadcast %63 : vector<8x1xf32> to vector<8x8xf32>
    %66 = arith.divf %64, %65 : vector<8x8xf32>
    %c0_43 = arith.constant 0 : index
    %c24_44 = arith.constant 24 : index
    %67 = vector.load %arg8[%c0_43, %c24_44] : memref<8x32xf32, #tpu.memory_space<vmem>>, vector<8x8xf32>
    tpu.vector_store %arg8[%c0_43, %c24_44], %66 {strides = array<i32>} : memref<8x32xf32, #tpu.memory_space<vmem>>, vector<8x8xf32>,
    %c0_45 = arith.constant 0 : index
    %c0_46 = arith.constant 0 : index
    %68 = vector.load %arg8[%c0_45, %c0_46] : memref<8x32xf32, #tpu.memory_space<vmem>>, vector<8x32xf32>
    %c0_47 = arith.constant 0 : index
    %c0_48 = arith.constant 0 : index
    %69 = vector.load %arg4[%c0_47, %c0_48] : memref<32x32xf32, #tpu.memory_space<vmem>>, vector<32x32xf32>
    %cst_49 = arith.constant dense<0.000000e+00> : vector<8x32xf32>
    %70 = tpu.matmul %68, %69, %cst_49 {dimension_numbers = #tpu.dot_dimension_numbers<[1], [0], [0], [1], [0, 0, 1, 1], [], []>} : vector<8x32xf32>, vector<32x32xf32>, vector<8x32xf32> -> vector<8x32xf32>
    %c0_50 = arith.constant 0 : index
    %c0_51 = arith.constant 0 : index
    %71 = vector.load %arg5[%c0_50, %c0_51] : memref<1x32xf32, #tpu.memory_space<vmem>>, vector<1x32xf32>
    %72 = vector.broadcast %71 : vector<1x32xf32> to vector<8x32xf32>
    %73 = arith.addf %70, %72 : vector<8x32xf32>
    %c0_52 = arith.constant 0 : index
    %c0_53 = arith.constant 0 : index
    %c0_54 = arith.constant 0 : index
    %74 = vector.load %arg6[%c0_52, %c0_53, %c0_54] : memref<1x8x32xf32, #tpu.memory_space<vmem>>, vector<1x8x32xf32>
    %75 = vector.shape_cast %74 : vector<1x8x32xf32> to vector<8x32xf32>
    %76 = vector.shape_cast %73 : vector<8x32xf32> to vector<1x8x32xf32>
    tpu.vector_store %arg6[%c0_52, %c0_53, %c0_54], %76 {strides = array<i32>} : memref<1x8x32xf32, #tpu.memory_space<vmem>>, vector<1x8x32xf32>,
    return
  }
  func.func @transform_0(%arg0: i32) -> (i32, i32, i32) {
    %c0_i32 = arith.constant 0 : i32
    %c0_i32_0 = arith.constant 0 : i32
    %c0_i32_1 = arith.constant 0 : i32
    return %arg0, %c0_i32, %c0_i32_0 : i32, i32, i32
  }
  func.func @transform_1(%arg0: i32) -> (i32, i32) {
    %c0_i32 = arith.constant 0 : i32
    %c0_i32_0 = arith.constant 0 : i32
    %c0_i32_1 = arith.constant 0 : i32
    return %c0_i32, %c0_i32_0 : i32, i32
  }
  func.func @transform_2(%arg0: i32) -> (i32, i32) {
    %c0_i32 = arith.constant 0 : i32
    %c0_i32_0 = arith.constant 0 : i32
    %c0_i32_1 = arith.constant 0 : i32
    return %c0_i32, %c0_i32_0 : i32, i32
  }
  func.func @transform_3(%arg0: i32) -> (i32, i32) {
    %c0_i32 = arith.constant 0 : i32
    %c0_i32_0 = arith.constant 0 : i32
    %c0_i32_1 = arith.constant 0 : i32
    return %c0_i32, %c0_i32_0 : i32, i32
  }
  func.func @transform_4(%arg0: i32) -> (i32, i32) {
    %c0_i32 = arith.constant 0 : i32
    %c0_i32_0 = arith.constant 0 : i32
    %c0_i32_1 = arith.constant 0 : i32
    return %c0_i32, %c0_i32_0 : i32, i32
  }
  func.func @transform_5(%arg0: i32) -> (i32, i32, i32) {
    %c0_i32 = arith.constant 0 : i32
    %c0_i32_0 = arith.constant 0 : i32
    %c0_i32_1 = arith.constant 0 : i32
    return %arg0, %c0_i32, %c0_i32_0 : i32, i32, i32
  }
}

</mosaic_0001>

<llo_original>
// kernel: tpu_custom_call.1
$region0: #{tpu_custom_call.1}
  #allocation0 [shape = 'u32[]', space=smem, size = 0x4, offset = 0x4, fixed_abs, tag = 'smem constant byte address 0x4 - core index']
  #allocation1 [shape = 'u32[72,128]{1,0:T(1,128)}', space=vmem, size = 0x9000, scoped, tag = 'internal scratch']
  #allocation2 [shape = 'f32[8,96]{1,0:T(8,128)}', space=vmem, size = 0x1000, scoped, tag = 'scratch operand']
  #allocation3 [shape = 'f32[8,32]{1,0:T(8,128)}', space=vmem, size = 0x1000, scoped, tag = 'scratch operand']
  %s0 = inlined_call_operand.hbm [shape: f32[2,8,32], index: 0, kind: input, shape index: {}]
  %s1 = inlined_call_operand.hbm [shape: f32[32,96], index: 1, kind: input, shape index: {}]
  %s2 = inlined_call_operand.vmem [shape: f32[1,96], index: 2, kind: input, shape index: {}]
  %s3 = inlined_call_operand.hbm [shape: f32[32,32], index: 3, kind: input, shape index: {}]
  %s4 = inlined_call_operand.vmem [shape: f32[1,32], index: 4, kind: input, shape index: {}]
  %s5 = inlined_call_operand.hbm [shape: f32[2,8,32], index: 5, kind: output, shape index: {}]
  %s6 = sld [smem:[#allocation0]]
  $region65: #{tpu_custom_call.1} parent=0
    _
  %s8 = ssub.s32 1, %s6
  %s9 = scalar_select 0, %s8, %s6
  $region1: #{tpu_custom_call.1} parent=0
    #allocation4 [shape = 'u8[8192]{0}', space=vmem, size = 0x2000, scoped, tag = 'input window, operand 0']
    #allocation5 [shape = 's32[2]{0}', space=sflag, size = 0x8, scoped, tag = 'scoped memory for tpu_custom_call.1']
    #allocation6 [shape = 's32[2]{0}', space=sflag, size = 0x8, scoped, tag = 'scoped memory for tpu_custom_call.1']
    #allocation7 [shape = 'u8[16384]{0}', space=vmem, size = 0x4000, scoped, tag = 'input window, operand 1, single buffered']
    #allocation8 [shape = 's32[1]{0}', space=sflag, size = 0x4, scoped, tag = 'scoped memory for tpu_custom_call.1']
    #allocation9 [shape = 'u8[16384]{0}', space=vmem, size = 0x4000, scoped, tag = 'input window, operand 3, single buffered']
    #allocation10 [shape = 'u8[8192]{0}', space=vmem, size = 0x2000, scoped, tag = 'output window, operand 0']
    %10 = vsyncpa [#allocation5], 0
    %s11 = scalar_lea.sflag [#allocation5], 1
    %12 = vsyncpa %s11, 0
    %13 = vsyncpa [#allocation8], 0
    %14 = vsyncpa [#allocation6], 0
    %s15 = scalar_lea.sflag [#allocation6], 1
    %16 = vsyncpa %s15, 0
    loop: start=0, step=1, limit=4
    $region2: #{tpu_custom_call.1} parent=1 // loop_pre_header
      _
    $region3: #{tpu_custom_call.1} parent=1 // loop_header
      %s18 = sphi 0, %s22
      %p19 = scmp.ge.s32.totalorder %s18, 4
      %s28 = sphi 0, %s30
      %s31 = sphi 0, %s28
      %s32 = sphi 0, %s31
      %s48 = sphi 0, %s32
      %s52 = sphi 0, %s52
      %s54 = sphi 0, %s52
      %s55 = sphi 0, %s54
      %s69 = sphi 0, %s55
      %s73 = sphi 0, %s73
      %s75 = sphi 0, %s73
      %s76 = sphi 0, %s75
      %s90 = sphi 0, %s76
      %s94 = sphi 0, %s94
      %s96 = sphi 0, %s94
      %s97 = sphi 0, %s96
      %s111 = sphi 0, %s97
      %s115 = sphi 0, %s115
      %s117 = sphi 0, %s115
      %s118 = sphi 0, %s117
      %s132 = sphi 0, %s118
      %s138 = sphi 0, %s140
      %s141 = sphi 0, %s138
      %s142 = sphi 0, %s141
      %s158 = sphi 0, %s142
    $region4: #{tpu_custom_call.1} parent=1 // loop_header_branch
      %21 = sbr.rel (%p19) target = $region8
    $region5: #{tpu_custom_call.1} parent=1 // loop_body
      %s23 = ssub.s32 %s18, 1
      %s24 = ssub.s32 %s18, 2
      %s25 = sadd.s32 %s18, 1
      %s26 = ssub.s32 %s18, %s25
      %p27 = scmp.eq.s32.totalorder %s26, 0
      %s29 = sadd.s32 %s28, 1
      %s30 = scalar_select %p27, %s28, %s29
      %p33 = pneg %p27
      %p34 = scmp.eq.s32.totalorder %s18, 1
      %p35 = por %p33, %p34
      %p36 = scmp.ne.s32.totalorder %s28, %s31
      %p37 = scmp.eq.s32.totalorder %s18, 0
      %p38 = por %p36, %p37
      %p39 = scmp.ne.s32.totalorder %s28, %s31
      %p40 = scmp.eq.s32.totalorder %s23, 1
      %p41 = por %p39, %p40
      %p42 = scmp.ne.s32.totalorder %s31, %s32
      %p43 = scmp.eq.s32.totalorder %s23, 0
      %p44 = por %p42, %p43
      %p45 = scmp.ne.s32.totalorder %s31, %s32
      %p46 = scmp.eq.s32.totalorder %s24, 1
      %p47 = por %p45, %p46
      %p49 = scmp.ne.s32.totalorder %s32, %s48
      %p50 = scmp.eq.s32.totalorder %s24, 0
      %p51 = por %p49, %p50
      %s53 = sadd.s32 %s52, 1
      %p56 = scmp.eq.s32.totalorder %s18, 1
      %p57 = scmp.ne.s32.totalorder %s52, %s54
      %p58 = scmp.eq.s32.totalorder %s18, 0
      %p59 = por %p57, %p58
      %p60 = scmp.ne.s32.totalorder %s52, %s54
      %p61 = scmp.eq.s32.totalorder %s23, 1
      %p62 = por %p60, %p61
      %p63 = scmp.ne.s32.totalorder %s54, %s55
      %p64 = scmp.eq.s32.totalorder %s23, 0
      %p65 = por %p63, %p64
      %p66 = scmp.ne.s32.totalorder %s54, %s55
      %p67 = scmp.eq.s32.totalorder %s24, 1
      %p68 = por %p66, %p67
      %p70 = scmp.ne.s32.totalorder %s55, %s69
      %p71 = scmp.eq.s32.totalorder %s24, 0
      %p72 = por %p70, %p71
      %s74 = sadd.s32 %s73, 1
      %p77 = scmp.eq.s32.totalorder %s18, 1
      %p78 = scmp.ne.s32.totalorder %s73, %s75
      %p79 = scmp.eq.s32.totalorder %s18, 0
      %p80 = por %p78, %p79
      %p81 = scmp.ne.s32.totalorder %s73, %s75
      %p82 = scmp.eq.s32.totalorder %s23, 1
      %p83 = por %p81, %p82
      %p84 = scmp.ne.s32.totalorder %s75, %s76
      %p85 = scmp.eq.s32.totalorder %s23, 0
      %p86 = por %p84, %p85
      %p87 = scmp.ne.s32.totalorder %s75, %s76
      %p88 = scmp.eq.s32.totalorder %s24, 1
      %p89 = por %p87, %p88
      %p91 = scmp.ne.s32.totalorder %s76, %s90
      %p92 = scmp.eq.s32.totalorder %s24, 0
      %p93 = por %p91, %p92
      %s95 = sadd.s32 %s94, 1
      %p98 = scmp.eq.s32.totalorder %s18, 1
      %p99 = scmp.ne.s32.totalorder %s94, %s96
      %p100 = scmp.eq.s32.totalorder %s18, 0
      %p101 = por %p99, %p100
      %p102 = scmp.ne.s32.totalorder %s94, %s96
      %p103 = scmp.eq.s32.totalorder %s23, 1
      %p104 = por %p102, %p103
      %p105 = scmp.ne.s32.totalorder %s96, %s97
      %p106 = scmp.eq.s32.totalorder %s23, 0
      %p107 = por %p105, %p106
      %p108 = scmp.ne.s32.totalorder %s96, %s97
      %p109 = scmp.eq.s32.totalorder %s24, 1
      %p110 = por %p108, %p109
      %p112 = scmp.ne.s32.totalorder %s97, %s111
      %p113 = scmp.eq.s32.totalorder %s24, 0
      %p114 = por %p112, %p113
      %s116 = sadd.s32 %s115, 1
      %p119 = scmp.eq.s32.totalorder %s18, 1
      %p120 = scmp.ne.s32.totalorder %s115, %s117
      %p121 = scmp.eq.s32.totalorder %s18, 0
      %p122 = por %p120, %p121
      %p123 = scmp.ne.s32.totalorder %s115, %s117
      %p124 = scmp.eq.s32.totalorder %s23, 1
      %p125 = por %p123, %p124
      %p126 = scmp.ne.s32.totalorder %s117, %s118
      %p127 = scmp.eq.s32.totalorder %s23, 0
      %p128 = por %p126, %p127
      %p129 = scmp.ne.s32.totalorder %s117, %s118
      %p130 = scmp.eq.s32.totalorder %s24, 1
      %p131 = por %p129, %p130
      %p133 = scmp.ne.s32.totalorder %s118, %s132
      %p134 = scmp.eq.s32.totalorder %s24, 0
      %p135 = por %p133, %p134
      %s136 = ssub.s32 %s18, %s25
      %p137 = scmp.eq.s32.totalorder %s136, 0
      %s139 = sadd.s32 %s138, 1
      %s140 = scalar_select %p137, %s138, %s139
      %p143 = pneg %p137
      %p144 = scmp.eq.s32.totalorder %s18, 1
      %p145 = por %p143, %p144
      %p146 = scmp.ne.s32.totalorder %s138, %s141
      %p147 = scmp.eq.s32.totalorder %s18, 0
      %p148 = por %p146, %p147
      %p149 = scmp.ne.s32.totalorder %s138, %s141
      %p150 = scmp.eq.s32.totalorder %s23, 1
      %p151 = por %p149, %p150
      %p152 = scmp.ne.s32.totalorder %s141, %s142
      %p153 = scmp.eq.s32.totalorder %s23, 0
      %p154 = por %p152, %p153
      %p155 = scmp.ne.s32.totalorder %s141, %s142
      %p156 = scmp.eq.s32.totalorder %s24, 1
      %p157 = por %p155, %p156
      %p159 = scmp.ne.s32.totalorder %s142, %s158
      %p160 = scmp.eq.s32.totalorder %s24, 0
      %p161 = por %p159, %p160
      %p162 = scmp.le.s32.totalorder 1, %s18
      %p163 = scmp.lt.s32.totalorder %s18, 3
      %p164 = pnand %p162, %p163
      %p165 = pneg %p164
      // Predicated region
      $region9: #{tpu_custom_call.1} parent=5 // pred_check
        _
      $region10: #{tpu_custom_call.1} parent=5 // pred_check_branch
        %167 = sbr.rel (%p164) target = $region12
      $region11: #{tpu_custom_call.1} parent=5 // pred_region
        %s168 = ssub.s32 %s18, 1
        // Predicated region
        $region13: #{tpu_custom_call.1} parent=11 // pred_check
          %p169 = pneg %p65
        $region14: #{tpu_custom_call.1} parent=11 // pred_check_branch
          %171 = sbr.rel (%p169) target = $region16
        $region15: #{tpu_custom_call.1} parent=11 // pred_region
          %173 = vsyncadd [#allocation8], 0
          %s174 = sshll.u32 %s1, 4
          %s175 = int_to_ptr.hbm [resolvable:$true] %s174
          %s176 = sshll.u32 [#allocation7], 4
          %s177 = int_to_ptr.vmem [resolvable:$true] %s176
          %182 = dma.hbm_to_vmem [thread:$0]  %s175, 512, %s177, [#allocation8], 128, 128, 8
        $region16: #{tpu_custom_call.1} parent=11 // pred_fallthru
          _
        // Predicated region
        $region17: #{tpu_custom_call.1} parent=11 // pred_check
          %p183 = pneg %p86
        $region18: #{tpu_custom_call.1} parent=11 // pred_check_branch
          %185 = sbr.rel (%p183) target = $region20
        $region19: #{tpu_custom_call.1} parent=11 // pred_region
          _
        $region20: #{tpu_custom_call.1} parent=11 // pred_fallthru
          _
        // Predicated region
        $region21: #{tpu_custom_call.1} parent=11 // pred_check
          %p186 = pneg %p107
        $region22: #{tpu_custom_call.1} parent=11 // pred_check_branch
          %188 = sbr.rel (%p186) target = $region24
        $region23: #{tpu_custom_call.1} parent=11 // pred_region
          %190 = vsyncadd [#allocation8], 0
          %s191 = sshll.u32 %s3, 4
          %s192 = int_to_ptr.hbm [resolvable:$true] %s191
          %s193 = sshll.u32 [#allocation9], 4
          %s194 = int_to_ptr.vmem [resolvable:$true] %s193
          %199 = dma.hbm_to_vmem [thread:$0]  %s192, 512, %s194, [#allocation8], 128, 128, 8
        $region24: #{tpu_custom_call.1} parent=11 // pred_fallthru
          _
        // Predicated region
        $region25: #{tpu_custom_call.1} parent=11 // pred_check
          %p200 = pneg %p128
        $region26: #{tpu_custom_call.1} parent=11 // pred_check_branch
          %202 = sbr.rel (%p200) target = $region28
        $region27: #{tpu_custom_call.1} parent=11 // pred_region
          _
        $region28: #{tpu_custom_call.1} parent=11 // pred_fallthru
          _
      $region12: #{tpu_custom_call.1} parent=5 // pred_fallthru
        _
      %p203 = scmp.lt.s32.totalorder %s18, 2
      // Predicated region
      $region29: #{tpu_custom_call.1} parent=5 // pred_check
        %p204 = pneg %p203
      $region30: #{tpu_custom_call.1} parent=5 // pred_check_branch
        %206 = sbr.rel (%p204) target = $region32
      $region31: #{tpu_custom_call.1} parent=5 // pred_region
        // Predicated region
        $region33: #{tpu_custom_call.1} parent=31 // pred_check
          %p207 = pneg %p38
        $region34: #{tpu_custom_call.1} parent=31 // pred_check_branch
          %209 = sbr.rel (%p207) target = $region36
        $region35: #{tpu_custom_call.1} parent=31 // pred_region
          %s210 = sand.u32 %s28, 1
          %s211 = scalar_lea.sflag [#allocation5], %s210
          %s212 = sand.u32 %s28, 1
          %s213 = smul.addr %s212, 8
          %s214 = scalar_lea.vmem [#allocation4], %s213
          %216 = vsyncadd %s211, 0
          %s217 = smul.addr %s18, 8
          %s218 = scalar_lea.hbm %s0, %s217
          %s220 = sshll.u32 %s218, 4
          %s221 = int_to_ptr.hbm [resolvable:$true] %s220
          %s222 = sshll.u32 %s214, 4
          %s223 = int_to_ptr.vmem [resolvable:$true] %s222
          %225 = dma.hbm_to_vmem [thread:$0]  %s221, 128, %s223, %s211
        $region36: #{tpu_custom_call.1} parent=31 // pred_fallthru
          _
      $region32: #{tpu_custom_call.1} parent=5 // pred_fallthru
        _
      %p226 = scmp.le.s32.totalorder 1, %s18
      %p227 = scmp.lt.s32.totalorder %s18, 3
      %p228 = pnand %p226, %p227
      %p229 = pneg %p228
      // Predicated region
      $region37: #{tpu_custom_call.1} parent=5 // pred_check
        _
      $region38: #{tpu_custom_call.1} parent=5 // pred_check_branch
        %231 = sbr.rel (%p228) target = $region40
      $region39: #{tpu_custom_call.1} parent=5 // pred_region
        %s232 = ssub.s32 %s18, 1
        %s233 = sand.u32 %s31, 1
        %s234 = scalar_lea.sflag [#allocation5], %s233
        %s235 = sand.u32 %s31, 1
        %s236 = smul.addr %s235, 8
        %s237 = scalar_lea.vmem [#allocation4], %s236
        // Predicated region
        $region41: #{tpu_custom_call.1} parent=39 // pred_check
          %p238 = pneg %p44
        $region42: #{tpu_custom_call.1} parent=39 // pred_check_branch
          %240 = sbr.rel (%p238) target = $region44
        $region43: #{tpu_custom_call.1} parent=39 // pred_region
          %242 = dma.done %s234, 128
        $region44: #{tpu_custom_call.1} parent=39 // pred_fallthru
          _
        // Predicated region
        $region45: #{tpu_custom_call.1} parent=39 // pred_check
          %p243 = pneg %p65
        $region46: #{tpu_custom_call.1} parent=39 // pred_check_branch
          %245 = sbr.rel (%p243) target = $region48
        $region47: #{tpu_custom_call.1} parent=39 // pred_region
          %247 = dma.done [#allocation8], 512
        $region48: #{tpu_custom_call.1} parent=39 // pred_fallthru
          _
        // Predicated region
        $region49: #{tpu_custom_call.1} parent=39 // pred_check
          %p248 = pneg %p107
        $region50: #{tpu_custom_call.1} parent=39 // pred_check_branch
          %250 = sbr.rel (%p248) target = $region52
        $region51: #{tpu_custom_call.1} parent=39 // pred_region
          %252 = dma.done [#allocation8], 512
        $region52: #{tpu_custom_call.1} parent=39 // pred_fallthru
          _
        %s253 = sand.u32 %s31, 1
        %s254 = scalar_lea.sflag [#allocation5], %s253
        %s255 = sand.u32 %s31, 1
        %s256 = smul.addr %s255, 8
        %s257 = scalar_lea.vmem [#allocation4], %s256
        %p258 = pneg %p44
        %p259 = pneg %p41
        %p260 = pneg %p65
        %p261 = pneg %p62
        %p262 = pneg %p86
        %p263 = pneg %p83
        %p264 = pneg %p107
        %p265 = pneg %p104
        %p266 = pneg %p128
        %p267 = pneg %p125
        %p268 = pneg %p154
        %p269 = pneg %p151
        %s270 = sand.u32 %s141, 1
        %s271 = scalar_lea.sflag [#allocation6], %s270
        %s272 = sand.u32 %s141, 1
        %s273 = smul.addr %s272, 8
        %s274 = scalar_lea.vmem [#allocation10], %s273
        %v275 = vld [vmem:[%s237] sm:$0xff]
        %v276 = vld [vmem:[#allocation7] sm:$0xff]
        %v277 = vld [vmem:[#allocation7 + $0x8] sm:$0xff]
        %v278 = vld [vmem:[#allocation7 + $0x10] sm:$0xff]
        %v279 = vld [vmem:[#allocation7 + $0x18] sm:$0xff]
        %v280 = vld [vmem:[%s2] sm:$0x1]
        %v282 = vperm.slane %v280, 0
        %vm284 = vcmask 261120
        %v286 = vsel %vm284, %v275, 0
        %288 = vmatpush.msra.mxu0 0.0
        %289 = vmatpush.msra.mxu0 0.0
        %290 = vmatpush.msra.mxu0 0.0
        %291 = vmatpush.msra.mxu0 0.0
        %292 = vmatpush.msra.mxu0 0.0
        %293 = vmatpush.msra.mxu0 0.0
        %294 = vmatpush.msra.mxu0 0.0
        %295 = vmatpush.msra.mxu0 0.0
        %296 = vmatpush.msra.mxu0 0.0
        %297 = vmatpush.msra.mxu0 0.0
        %298 = vmatpush.msra.mxu0 0.0
        %299 = vmatpush.msra.mxu0 0.0
        %300 = vmatpush.msra.mxu0 %v279
        %301 = vmatpush.msra.mxu0 %v278
        %302 = vmatpush.msra.mxu0 %v277
        %303 = vmatpush.msra.mxu0 %v276
        %304 = vmatmul.f32.gmra.mxu0 %v286
        %v305 = vpop.f32.mrf.mxu0
        %v306 = vadd.f32 %v282, %v305
        %307 = vdwg.mxu0
        %vm308 = vcmask 785408
        %309 = vst.msk [vmem:[#allocation2] sm:$0xff] %vm308, %v306
        %v310 = vld [vmem:[#allocation2] sm:$0xff]
        %312 = vrot.lane.b32.xlu0 %v310, 96
        %v313 = vpop.permute.xlu0 %312
        %vm314 = vcmask 64512
        %v315 = vsel %vm314, %v310, 0
        %v317 = vsel %vm314, %v313, 0
        %319 = vmatpush.xpose.msra.mxu0 0.0
        %320 = vmatpush.xpose.msra.mxu0 0.0
        %321 = vmatpush.xpose.msra.mxu0 0.0
        %322 = vmatpush.xpose.msra.mxu0 0.0
        %323 = vmatpush.xpose.msra.mxu0 0.0
        %324 = vmatpush.xpose.msra.mxu0 0.0
        %325 = vmatpush.xpose.msra.mxu0 0.0
        %326 = vmatpush.xpose.msra.mxu0 0.0
        %327 = vmatpush.xpose.msra.mxu0 0.0
        %328 = vmatpush.xpose.msra.mxu0 0.0
        %329 = vmatpush.xpose.msra.mxu0 0.0
        %330 = vmatpush.xpose.msra.mxu0 0.0
        %331 = vmatpush.xpose.msra.mxu0 0.0
        %332 = vmatpush.xpose.msra.mxu0 0.0
        %333 = vmatpush.xpose.msra.mxu0 0.0
        %334 = vmatpush.xpose.msra.mxu0 %v317
        %335 = vmatmul.f32.gmra.mxu0 %v315
        %v336 = vpop.f32.mrf.mxu0
        %v337 = vadd.f32 0.0, %v336
        %338 = vdwg.mxu0
        %v339 = vsel %vm314, %v337, -inf
        %340 = vmax.xlane.f32.xlu0 %v339
        %v341 = vpop.xlane.xlu0 %340
        %v342 = vsub.f32 %v337, %v341
        %v343 = vmul.f32 %v342, 1.442695
        %v344 = vpow.pop %v343
        %v345 = vsel %vm314, %v344, 0.0
        %346 = vadd.xlane.f32.xlu0 %v345
        %v347 = vpop.xlane.xlu0 %346
        %348 = vrot.lane.b32.xlu0 %v310, 64
        %v349 = vpop.permute.xlu0 %348
        %v352 = vsel %vm314, %v344, 0
        %354 = vmatpush.msra.mxu0 0.0
        %355 = vmatpush.msra.mxu0 0.0
        %356 = vmatpush.msra.mxu0 0.0
        %357 = vmatpush.msra.mxu0 0.0
        %358 = vmatpush.msra.mxu0 0.0
        %359 = vmatpush.msra.mxu0 0.0
        %360 = vmatpush.msra.mxu0 0.0
        %361 = vmatpush.msra.mxu0 0.0
        %362 = vmatpush.msra.mxu0 0.0
        %363 = vmatpush.msra.mxu0 0.0
        %364 = vmatpush.msra.mxu0 0.0
        %365 = vmatpush.msra.mxu0 0.0
        %366 = vmatpush.msra.mxu0 0.0
        %367 = vmatpush.msra.mxu0 0.0
        %368 = vmatpush.msra.mxu0 0.0
        %369 = vmatpush.msra.mxu0 %v349
        %370 = vmatmul.f32.gmra.mxu0 %v352
        %v371 = vpop.f32.mrf.mxu0
        %v372 = vadd.f32 0.0, %v371
        %373 = vdwg.mxu0
        %v374 = vrcp.pop %v347
        %v375 = vmul.f32 %v347, %v374
        %v376 = vsub.f32 1.0, %v375
        %v377 = vmul.f32 %v374, %v376
        %v378 = vadd.f32 %v374, %v377
        %vm379 = vweird.f32 %v347
        %vm380 = vweird.f32 %v374
        %vm381 = vmor %vm379, %vm380
        %v382 = vsel %vm381, %v374, %v378
        %v383 = vand.u32 2147483647, %v347
        %vm384 = vcmp.eq.f32.partialorder %v383, 8.507059e+37
        %v385 = vand.u32 %v347, 2147483648
        %v386 = vor.u32 1.1754944e-38, %v385
        %v387 = vsel %vm384, %v386, %v382
        %v388 = vmul.f32 %v372, %v387
        %389 = vst.msk [vmem:[#allocation3] sm:$0xff] %vm314, %v388
        %v390 = vld [vmem:[#allocation2] sm:$0xff]
        %392 = vrot.lane.b32.xlu0 %v390, 120
        %v393 = vpop.permute.xlu0 %392
        %394 = vrot.lane.b32.xlu0 %v390, 88
        %v395 = vpop.permute.xlu0 %394
        %v396 = vsel %vm314, %v393, 0
        %v398 = vsel %vm314, %v395, 0
        %400 = vmatpush.xpose.msra.mxu0 0.0
        %401 = vmatpush.xpose.msra.mxu0 0.0
        %402 = vmatpush.xpose.msra.mxu0 0.0
        %403 = vmatpush.xpose.msra.mxu0 0.0
        %404 = vmatpush.xpose.msra.mxu0 0.0
        %405 = vmatpush.xpose.msra.mxu0 0.0
        %406 = vmatpush.xpose.msra.mxu0 0.0
        %407 = vmatpush.xpose.msra.mxu0 0.0
        %408 = vmatpush.xpose.msra.mxu0 0.0
        %409 = vmatpush.xpose.msra.mxu0 0.0
        %410 = vmatpush.xpose.msra.mxu0 0.0
        %411 = vmatpush.xpose.msra.mxu0 0.0
        %412 = vmatpush.xpose.msra.mxu0 0.0
        %413 = vmatpush.xpose.msra.mxu0 0.0
        %414 = vmatpush.xpose.msra.mxu0 0.0
        %415 = vmatpush.xpose.msra.mxu0 %v398
        %416 = vmatmul.f32.gmra.mxu0 %v396
        %v417 = vpop.f32.mrf.mxu0
        %v418 = vadd.f32 0.0, %v417
        %419 = vdwg.mxu0
        %v420 = vsel %vm314, %v418, -inf
        %421 = vmax.xlane.f32.xlu0 %v420
        %v422 = vpop.xlane.xlu0 %421
        %v423 = vsub.f32 %v418, %v422
        %v424 = vmul.f32 %v423, 1.442695
        %v425 = vpow.pop %v424
        %v426 = vsel %vm314, %v425, 0.0
        %427 = vadd.xlane.f32.xlu0 %v426
        %v428 = vpop.xlane.xlu0 %427
        %429 = vrot.lane.b32.xlu0 %v390, 56
        %v430 = vpop.permute.xlu0 %429
        %v433 = vsel %vm314, %v425, 0
        %435 = vmatpush.msra.mxu0 0.0
        %436 = vmatpush.msra.mxu0 0.0
        %437 = vmatpush.msra.mxu0 0.0
        %438 = vmatpush.msra.mxu0 0.0
        %439 = vmatpush.msra.mxu0 0.0
        %440 = vmatpush.msra.mxu0 0.0
        %441 = vmatpush.msra.mxu0 0.0
        %442 = vmatpush.msra.mxu0 0.0
        %443 = vmatpush.msra.mxu0 0.0
        %444 = vmatpush.msra.mxu0 0.0
        %445 = vmatpush.msra.mxu0 0.0
        %446 = vmatpush.msra.mxu0 0.0
        %447 = vmatpush.msra.mxu0 0.0
        %448 = vmatpush.msra.mxu0 0.0
        %449 = vmatpush.msra.mxu0 0.0
        %450 = vmatpush.msra.mxu0 %v430
        %451 = vmatmul.f32.gmra.mxu0 %v433
        %v452 = vpop.f32.mrf.mxu0
        %v453 = vadd.f32 0.0, %v452
        %454 = vdwg.mxu0
        %v455 = vrcp.pop %v428
        %v456 = vmul.f32 %v428, %v455
        %v457 = vsub.f32 1.0, %v456
        %v458 = vmul.f32 %v455, %v457
        %v459 = vadd.f32 %v455, %v458
        %vm460 = vweird.f32 %v428
        %vm461 = vweird.f32 %v455
        %vm462 = vmor %vm460, %vm461
        %v463 = vsel %vm462, %v455, %v459
        %v464 = vand.u32 2147483647, %v428
        %vm465 = vcmp.eq.f32.partialorder %v464, 8.507059e+37
        %v466 = vand.u32 %v428, 2147483648
        %v467 = vor.u32 1.1754944e-38, %v466
        %v468 = vsel %vm465, %v467, %v463
        %v469 = vmul.f32 %v453, %v468
        %471 = vrot.lane.b32.xlu0 %v469, 8
        %v472 = vpop.permute.xlu0 %471
        %vm474 = vcmask 130112
        %475 = vst.msk [vmem:[#allocation3] sm:$0xff] %vm474, %v472
        %v476 = vld [vmem:[#allocation2] sm:$0xff]
        %478 = vrot.lane.b32.xlu0 %v476, 112
        %v479 = vpop.permute.xlu0 %478
        %480 = vrot.lane.b32.xlu0 %v476, 80
        %v481 = vpop.permute.xlu0 %480
        %v482 = vsel %vm314, %v479, 0
        %v484 = vsel %vm314, %v481, 0
        %486 = vmatpush.xpose.msra.mxu0 0.0
        %487 = vmatpush.xpose.msra.mxu0 0.0
        %488 = vmatpush.xpose.msra.mxu0 0.0
        %489 = vmatpush.xpose.msra.mxu0 0.0
        %490 = vmatpush.xpose.msra.mxu0 0.0
        %491 = vmatpush.xpose.msra.mxu0 0.0
        %492 = vmatpush.xpose.msra.mxu0 0.0
        %493 = vmatpush.xpose.msra.mxu0 0.0
        %494 = vmatpush.xpose.msra.mxu0 0.0
        %495 = vmatpush.xpose.msra.mxu0 0.0
        %496 = vmatpush.xpose.msra.mxu0 0.0
        %497 = vmatpush.xpose.msra.mxu0 0.0
        %498 = vmatpush.xpose.msra.mxu0 0.0
        %499 = vmatpush.xpose.msra.mxu0 0.0
        %500 = vmatpush.xpose.msra.mxu0 0.0
        %501 = vmatpush.xpose.msra.mxu0 %v484
        %502 = vmatmul.f32.gmra.mxu0 %v482
        %v503 = vpop.f32.mrf.mxu0
        %v504 = vadd.f32 0.0, %v503
        %505 = vdwg.mxu0
        %v506 = vsel %vm314, %v504, -inf
        %507 = vmax.xlane.f32.xlu0 %v506
        %v508 = vpop.xlane.xlu0 %507
        %v509 = vsub.f32 %v504, %v508
        %v510 = vmul.f32 %v509, 1.442695
        %v511 = vpow.pop %v510
        %v512 = vsel %vm314, %v511, 0.0
        %513 = vadd.xlane.f32.xlu0 %v512
        %v514 = vpop.xlane.xlu0 %513
        %515 = vrot.lane.b32.xlu0 %v476, 48
        %v516 = vpop.permute.xlu0 %515
        %v519 = vsel %vm314, %v511, 0
        %521 = vmatpush.msra.mxu0 0.0
        %522 = vmatpush.msra.mxu0 0.0
        %523 = vmatpush.msra.mxu0 0.0
        %524 = vmatpush.msra.mxu0 0.0
        %525 = vmatpush.msra.mxu0 0.0
        %526 = vmatpush.msra.mxu0 0.0
        %527 = vmatpush.msra.mxu0 0.0
        %528 = vmatpush.msra.mxu0 0.0
        %529 = vmatpush.msra.mxu0 0.0
        %530 = vmatpush.msra.mxu0 0.0
        %531 = vmatpush.msra.mxu0 0.0
        %532 = vmatpush.msra.mxu0 0.0
        %533 = vmatpush.msra.mxu0 0.0
        %534 = vmatpush.msra.mxu0 0.0
        %535 = vmatpush.msra.mxu0 0.0
        %536 = vmatpush.msra.mxu0 %v516
        %537 = vmatmul.f32.gmra.mxu0 %v519
        %v538 = vpop.f32.mrf.mxu0
        %v539 = vadd.f32 0.0, %v538
        %540 = vdwg.mxu0
        %v541 = vrcp.pop %v514
        %v542 = vmul.f32 %v514, %v541
        %v543 = vsub.f32 1.0, %v542
        %v544 = vmul.f32 %v541, %v543
        %v545 = vadd.f32 %v541, %v544
        %vm546 = vweird.f32 %v514
        %vm547 = vweird.f32 %v541
        %vm548 = vmor %vm546, %vm547
        %v549 = vsel %vm548, %v541, %v545
        %v550 = vand.u32 2147483647, %v514
        %vm551 = vcmp.eq.f32.partialorder %v550, 8.507059e+37
        %v552 = vand.u32 %v514, 2147483648
        %v553 = vor.u32 1.1754944e-38, %v552
        %v554 = vsel %vm551, %v553, %v549
        %v555 = vmul.f32 %v539, %v554
        %557 = vrot.lane.b32.xlu0 %v555, 16
        %v558 = vpop.permute.xlu0 %557
        %vm560 = vcmask 195712
        %561 = vst.msk [vmem:[#allocation3] sm:$0xff] %vm560, %v558
        %v562 = vld [vmem:[#allocation2] sm:$0xff]
        %564 = vrot.lane.b32.xlu0 %v562, 104
        %v565 = vpop.permute.xlu0 %564
        %566 = vrot.lane.b32.xlu0 %v562, 72
        %v567 = vpop.permute.xlu0 %566
        %v568 = vsel %vm314, %v565, 0
        %v570 = vsel %vm314, %v567, 0
        %572 = vmatpush.xpose.msra.mxu0 0.0
        %573 = vmatpush.xpose.msra.mxu0 0.0
        %574 = vmatpush.xpose.msra.mxu0 0.0
        %575 = vmatpush.xpose.msra.mxu0 0.0
        %576 = vmatpush.xpose.msra.mxu0 0.0
        %577 = vmatpush.xpose.msra.mxu0 0.0
        %578 = vmatpush.xpose.msra.mxu0 0.0
        %579 = vmatpush.xpose.msra.mxu0 0.0
        %580 = vmatpush.xpose.msra.mxu0 0.0
        %581 = vmatpush.xpose.msra.mxu0 0.0
        %582 = vmatpush.xpose.msra.mxu0 0.0
        %583 = vmatpush.xpose.msra.mxu0 0.0
        %584 = vmatpush.xpose.msra.mxu0 0.0
        %585 = vmatpush.xpose.msra.mxu0 0.0
        %586 = vmatpush.xpose.msra.mxu0 0.0
        %587 = vmatpush.xpose.msra.mxu0 %v570
        %588 = vmatmul.f32.gmra.mxu0 %v568
        %v589 = vpop.f32.mrf.mxu0
        %v590 = vadd.f32 0.0, %v589
        %591 = vdwg.mxu0
        %v592 = vsel %vm314, %v590, -inf
        %593 = vmax.xlane.f32.xlu0 %v592
        %v594 = vpop.xlane.xlu0 %593
        %v595 = vsub.f32 %v590, %v594
        %v596 = vmul.f32 %v595, 1.442695
        %v597 = vpow.pop %v596
        %v598 = vsel %vm314, %v597, 0.0
        %599 = vadd.xlane.f32.xlu0 %v598
        %v600 = vpop.xlane.xlu0 %599
        %601 = vrot.lane.b32.xlu0 %v562, 40
        %v602 = vpop.permute.xlu0 %601
        %v605 = vsel %vm314, %v597, 0
        %607 = vmatpush.msra.mxu0 0.0
        %608 = vmatpush.msra.mxu0 0.0
        %609 = vmatpush.msra.mxu0 0.0
        %610 = vmatpush.msra.mxu0 0.0
        %611 = vmatpush.msra.mxu0 0.0
        %612 = vmatpush.msra.mxu0 0.0
        %613 = vmatpush.msra.mxu0 0.0
        %614 = vmatpush.msra.mxu0 0.0
        %615 = vmatpush.msra.mxu0 0.0
        %616 = vmatpush.msra.mxu0 0.0
        %617 = vmatpush.msra.mxu0 0.0
        %618 = vmatpush.msra.mxu0 0.0
        %619 = vmatpush.msra.mxu0 0.0
        %620 = vmatpush.msra.mxu0 0.0
        %621 = vmatpush.msra.mxu0 0.0
        %622 = vmatpush.msra.mxu0 %v602
        %623 = vmatmul.f32.gmra.mxu0 %v605
        %v624 = vpop.f32.mrf.mxu0
        %v625 = vadd.f32 0.0, %v624
        %626 = vdwg.mxu0
        %v627 = vrcp.pop %v600
        %v628 = vmul.f32 %v600, %v627
        %v629 = vsub.f32 1.0, %v628
        %v630 = vmul.f32 %v627, %v629
        %v631 = vadd.f32 %v627, %v630
        %vm632 = vweird.f32 %v600
        %vm633 = vweird.f32 %v627
        %vm634 = vmor %vm632, %vm633
        %v635 = vsel %vm634, %v627, %v631
        %v636 = vand.u32 2147483647, %v600
        %vm637 = vcmp.eq.f32.partialorder %v636, 8.507059e+37
        %v638 = vand.u32 %v600, 2147483648
        %v639 = vor.u32 1.1754944e-38, %v638
        %v640 = vsel %vm637, %v639, %v635
        %v641 = vmul.f32 %v625, %v640
        %643 = vrot.lane.b32.xlu0 %v641, 24
        %v644 = vpop.permute.xlu0 %643
        %vm646 = vcmask 261312
        %647 = vst.msk [vmem:[#allocation3] sm:$0xff] %vm646, %v644
        %v648 = vld [vmem:[#allocation3] sm:$0xff]
        %v649 = vld [vmem:[#allocation9] sm:$0xff]
        %v650 = vld [vmem:[#allocation9 + $0x8] sm:$0xff]
        %v651 = vld [vmem:[#allocation9 + $0x10] sm:$0xff]
        %v652 = vld [vmem:[#allocation9 + $0x18] sm:$0xff]
        %v653 = vld [vmem:[%s4] sm:$0x1]
        %v655 = vperm.slane %v653, 0
        %v658 = vsel %vm284, %v648, 0
        %660 = vmatpush.msra.mxu0 0.0
        %661 = vmatpush.msra.mxu0 0.0
        %662 = vmatpush.msra.mxu0 0.0
        %663 = vmatpush.msra.mxu0 0.0
        %664 = vmatpush.msra.mxu0 0.0
        %665 = vmatpush.msra.mxu0 0.0
        %666 = vmatpush.msra.mxu0 0.0
        %667 = vmatpush.msra.mxu0 0.0
        %668 = vmatpush.msra.mxu0 0.0
        %669 = vmatpush.msra.mxu0 0.0
        %670 = vmatpush.msra.mxu0 0.0
        %671 = vmatpush.msra.mxu0 0.0
        %672 = vmatpush.msra.mxu0 %v652
        %673 = vmatpush.msra.mxu0 %v651
        %674 = vmatpush.msra.mxu0 %v650
        %675 = vmatpush.msra.mxu0 %v649
        %676 = vmatmul.f32.gmra.mxu0 %v658
        %v677 = vpop.f32.mrf.mxu0
        %v678 = vadd.f32 %v655, %v677
        %679 = vdwg.mxu0
        %680 = vst.msk [vmem:[%s274] sm:$0xff] %vm284, %v678
        %s681 = sand.u32 %s141, 1
        %s682 = scalar_lea.sflag [#allocation6], %s681
        %s683 = sand.u32 %s141, 1
        %s684 = smul.addr %s683, 8
        %s685 = scalar_lea.vmem [#allocation10], %s684
        // Predicated region
        $region53: #{tpu_custom_call.1} parent=39 // pred_check
          %p686 = pneg %p151
        $region54: #{tpu_custom_call.1} parent=39 // pred_check_branch
          %688 = sbr.rel (%p686) target = $region56
        $region55: #{tpu_custom_call.1} parent=39 // pred_region
          %690 = vsyncadd %s682, 0
          %s691 = smul.addr %s23, 8
          %s692 = scalar_lea.hbm %s5, %s691
          %s694 = sshll.u32 %s685, 4
          %s695 = int_to_ptr.vmem [resolvable:$true] %s694
          %s696 = sshll.u32 %s692, 4
          %s697 = int_to_ptr.hbm [resolvable:$true] %s696
          %699 = dma.vmem_to_hbm [thread:$0]  %s695, 128, %s697, %s682
        $region56: #{tpu_custom_call.1} parent=39 // pred_fallthru
          _
      $region40: #{tpu_custom_call.1} parent=5 // pred_fallthru
        _
      %p700 = scmp.le.s32.totalorder 2, %s18
      // Predicated region
      $region57: #{tpu_custom_call.1} parent=5 // pred_check
        %p701 = pneg %p700
      $region58: #{tpu_custom_call.1} parent=5 // pred_check_branch
        %703 = sbr.rel (%p701) target = $region60
      $region59: #{tpu_custom_call.1} parent=5 // pred_region
        %s704 = ssub.s32 %s18, 2
        // Predicated region
        $region61: #{tpu_custom_call.1} parent=59 // pred_check
          %p705 = pneg %p157
        $region62: #{tpu_custom_call.1} parent=59 // pred_check_branch
          %707 = sbr.rel (%p705) target = $region64
        $region63: #{tpu_custom_call.1} parent=59 // pred_region
          %s708 = sand.u32 %s142, 1
          %s709 = scalar_lea.sflag [#allocation6], %s708
          %s710 = sand.u32 %s142, 1
          %s711 = smul.addr %s710, 8
          %s712 = scalar_lea.vmem [#allocation10], %s711
          %714 = dma.done %s709, 128
        $region64: #{tpu_custom_call.1} parent=59 // pred_fallthru
          _
      $region60: #{tpu_custom_call.1} parent=5 // pred_fallthru
        _
    $region6: #{tpu_custom_call.1} parent=1 // loop_footer
      %s22 = sadd.s32 1, %s18
    $region7: #{tpu_custom_call.1} parent=1 // loop_footer_branch
      %17 = sbr.rel target = $region3
    $region8: #{tpu_custom_call.1} parent=1 // loop_exit
      _
    %715 = vsyncpa [#allocation5], 1
    %s716 = scalar_lea.sflag [#allocation5], 1
    %717 = vsyncpa %s716, 1
    %718 = vsyncpa [#allocation8], 1
    %719 = vsyncpa [#allocation6], 1
    %s720 = scalar_lea.sflag [#allocation6], 1
    %721 = vsyncpa %s720, 1

</llo_original>
